<compile_context>
chip_gen: v7x
topology: tpu7x:2x2x1
jax: 0.10.0
libtpu: 0.0.40
codegen_flags: <defaults>
</compile_context>

<pallas_src>
import functools

import jax
import jax.numpy as jnp
from jax.experimental import pallas as pl
from jax.experimental.pallas import tpu as pltpu

N_IN, N_H1, N_H2, N_OUT = 8, 6, 4, 1
SUB, LANES = 8, 128                       # vreg sublane / lane extents
VREG_B = SUB * LANES                      # 1024 batch elems per f32 vreg


def _round_up(n, m):
    return ((n + m - 1) // m) * m


def mlp_kernel(x_ref, w1_ref, b1_ref, w2_ref, b2_ref, w3_ref, b3_ref, o_ref,
               *, slab, n_slabs):
    """One batch tile.  x_ref: (8, 8, lane), o_ref: (1, 8, lane).

    Batch elements live on (sublane, lane); features on the leading axis, so
    x_ref[k] is a dense (8, lane) plane (no relayout when slicing).
    """
    # Hoist all scalar weight/bias reads out of the slab loop: SMEM -> sregs
    # once per tile keeps the scalar-load slot off the per-slab critical path.
    w1 = [[w1_ref[j, k] for k in range(N_IN)] for j in range(N_H1)]
    b1 = [b1_ref[j] for j in range(N_H1)]
    w2 = [[w2_ref[j, k] for k in range(N_H1)] for j in range(N_H2)]
    b2 = [b2_ref[j] for j in range(N_H2)]
    w3 = [[w3_ref[j, k] for k in range(N_H2)] for j in range(N_OUT)]
    b3 = [b3_ref[j] for j in range(N_OUT)]

    def dense(w, b, rows, relu):
        # out[j] = act(sum_k w[j][k]*rows[k] + b[j]); pure VPU FMAs on dense
        # (8, slab) slabs, bias folded into the first FMA.
        outs = []
        for wj, bj in zip(w, b):
            acc = rows[0] * wj[0] + bj
            for k in range(1, len(rows)):
                acc = acc + rows[k] * wj[k]
            outs.append(jnp.maximum(acc, 0.0) if relu else acc)
        return outs

    # Slab loop: bounds live values (8 inputs + 6 accs at peak = 14 slabs) so
    # the whole chain stays register-resident even with multi-MiB tiles.
    @pl.loop(0, n_slabs)
    def _(s):
        c0 = pl.multiple_of(s * slab, slab)
        rows = [x_ref[k, :, pl.ds(c0, slab)] for k in range(N_IN)]  # (8, slab)
        h1 = dense(w1, b1, rows, relu=True)
        h2 = dense(w2, b2, h1, relu=True)
        z = dense(w3, b3, h2, relu=False)[0]
        # Exact sigmoid via one EUP tanh (EUP slot is otherwise idle).
        o_ref[0, :, pl.ds(c0, slab)] = 0.5 * jnp.tanh(0.5 * z) + 0.5


def mlp_forward(x, params, *, tile_b=131072):
    """x: (B, 8) float32, params in PyTorch layout ((out,in) weights).

    Returns (B, 1) float32, matching the PyTorch module's forward.
    """
    B = x.shape[0]
    assert x.shape[1] == N_IN, x.shape

    # Tile must hold a whole number of (8,128) batch vregs; batch padded to the
    # same granularity.  Default tile ~128K elems (4 MiB) amortizes per-step
    # overhead and stays far below even v7x's VMEM with double-buffering.
    tile_b = max(VREG_B, _round_up(tile_b, VREG_B))
    Bp = _round_up(B, VREG_B)
    tb = min(tile_b, Bp)
    Bp = _round_up(Bp, tb)
    lane = tb // SUB                      # lanes per tile
    slab = 256 if lane % 256 == 0 else 128
    n_slabs = lane // slab

    # TODO(synk): for production, have the upstream producer emit this
    # (8, 8, B/8) feature-major layout directly; the pad+transpose below is an
    # extra HBM pass in front of a memory-bound kernel.
    xt = (jnp.zeros((N_IN, Bp), jnp.float32)
          .at[:, :B].set(x.astype(jnp.float32).T)
          .reshape(N_IN, SUB, Bp // SUB))

    smem = pl.BlockSpec(memory_space=pltpu.MemorySpace.SMEM)
    kernel = functools.partial(mlp_kernel, slab=slab, n_slabs=n_slabs)

    out_t = pl.pallas_call(
        kernel,
        out_shape=jax.ShapeDtypeStruct((N_OUT, SUB, Bp // SUB), jnp.float32),
        grid=(Bp // tb,),
        in_specs=[
            pl.BlockSpec((N_IN, SUB, lane), lambda i: (0, 0, i)),  # x tile
            smem, smem,                                            # w1, b1
            smem, smem,                                            # w2, b2
            smem, smem,                                            # w3, b3
        ],
        out_specs=pl.BlockSpec((N_OUT, SUB, lane), lambda i: (0, 0, i)),
        compiler_params=pltpu.CompilerParams(
            dimension_semantics=("parallel",),      # shard batch over TCs
            vmem_limit_bytes=32 * 1024 * 1024,      # safe on v5e/v6e/v7x
        ),
    )(xt, params["w1"], params["b1"], params["w2"], params["b2"],
      params["w3"], params["b3"])

    return out_t.reshape(N_OUT, Bp)[:, :B].T       # back to (B, 1)


def init_params(key):
    """Deterministic init matching the PyTorch module's parameter shapes."""
    ks = jax.random.split(key, 6)

    def uniform_linear(kw, kb, out_f, in_f):
        # torch.nn.Linear default init: U(-1/sqrt(in), 1/sqrt(in))
        bound = 1.0 / jnp.sqrt(jnp.float32(in_f))
        w = jax.random.uniform(kw, (out_f, in_f), jnp.float32, -bound, bound)
        b = jax.random.uniform(kb, (out_f,), jnp.float32, -bound, bound)
        return w, b

    w1, b1 = uniform_linear(ks[0], ks[1], N_H1, N_IN)
    w2, b2 = uniform_linear(ks[2], ks[3], N_H2, N_H1)
    w3, b3 = uniform_linear(ks[4], ks[5], N_OUT, N_H2)
    return {"w1": w1, "b1": b1, "w2": w2, "b2": b2, "w3": w3, "b3": b3}


def reference_forward(x, p):
    """Plain-JAX reference for correctness checking."""
    h1 = jnp.maximum(x @ p["w1"].T + p["b1"], 0.0)
    h2 = jnp.maximum(h1 @ p["w2"].T + p["b2"], 0.0)
    return jax.nn.sigmoid(h2 @ p["w3"].T + p["b3"])


if __name__ == "__main__":
    key = jax.random.PRNGKey(0)
    k_x, k_p, k_x2 = jax.random.split(key, 3)
    params = init_params(k_p)

    # Small primary test (single tile, single slab).
    B = 8
    x = jax.random.normal(k_x, (B, N_IN), dtype=jnp.float32)
    out = jax.block_until_ready(mlp_forward(x, params))
    ref = reference_forward(x, params)
    assert out.shape == (B, 1), out.shape
    assert jnp.allclose(out, ref, atol=1e-4, rtol=1e-4), (out, ref)

    # Multi-tile / multi-grid-step path (still small): 3 grid steps of 1024.
    B2 = 2050
    x2 = jax.random.normal(k_x2, (B2, N_IN), dtype=jnp.float32)
    out2 = jax.block_until_ready(mlp_forward(x2, params, tile_b=1024))
    ref2 = reference_forward(x2, params)
    assert out2.shape == (B2, 1), out2.shape
    assert jnp.allclose(out2, ref2, atol=1e-4, rtol=1e-4)

    print("KERNEL_OK")
</pallas_src>

<mosaic_0001>
module attributes {stable_mosaic.version = 11 : i64} {
  func.func @mlp_kernel(%arg0: i32, %arg1: memref<8x8x128xf32, #tpu.memory_space<vmem>>, %arg2: memref<6x8xf32, #tpu.memory_space<smem>>, %arg3: memref<6xf32, #tpu.memory_space<smem>>, %arg4: memref<4x6xf32, #tpu.memory_space<smem>>, %arg5: memref<4xf32, #tpu.memory_space<smem>>, %arg6: memref<1x4xf32, #tpu.memory_space<smem>>, %arg7: memref<1xf32, #tpu.memory_space<smem>>, %arg8: memref<1x8x128xf32, #tpu.memory_space<vmem>>) attributes {dimension_semantics = [#tpu.dimension_semantics<parallel>], iteration_bounds = array<i64: 1>, scalar_prefetch = 0 : i64, scratch_operands = 0 : i64, tpu.core_type = #tpu.core_type<tc>, window_params = [{transform_indices = @transform_0, window_bounds = array<i64: 8, 8, 128>}, {transform_indices = @transform_1, window_bounds = array<i64: 6, 8>}, {transform_indices = @transform_2, window_bounds = array<i64: 6>}, {transform_indices = @transform_3, window_bounds = array<i64: 4, 6>}, {transform_indices = @transform_4, window_bounds = array<i64: 4>}, {transform_indices = @transform_5, window_bounds = array<i64: 1, 4>}, {transform_indices = @transform_6, window_bounds = array<i64: 1>}, {transform_indices = @transform_7, window_bounds = array<i64: 1, 8, 128>}]} {
    %c0 = arith.constant 0 : index
    %c0_0 = arith.constant 0 : index
    %0 = memref.load %arg2[%c0, %c0_0] : memref<6x8xf32, #tpu.memory_space<smem>>
    %c0_1 = arith.constant 0 : index
    %c1 = arith.constant 1 : index
    %1 = memref.load %arg2[%c0_1, %c1] : memref<6x8xf32, #tpu.memory_space<smem>>
    %c0_2 = arith.constant 0 : index
    %c2 = arith.constant 2 : index
    %2 = memref.load %arg2[%c0_2, %c2] : memref<6x8xf32, #tpu.memory_space<smem>>
    %c0_3 = arith.constant 0 : index
    %c3 = arith.constant 3 : index
    %3 = memref.load %arg2[%c0_3, %c3] : memref<6x8xf32, #tpu.memory_space<smem>>
    %c0_4 = arith.constant 0 : index
    %c4 = arith.constant 4 : index
    %4 = memref.load %arg2[%c0_4, %c4] : memref<6x8xf32, #tpu.memory_space<smem>>
    %c0_5 = arith.constant 0 : index
    %c5 = arith.constant 5 : index
    %5 = memref.load %arg2[%c0_5, %c5] : memref<6x8xf32, #tpu.memory_space<smem>>
    %c0_6 = arith.constant 0 : index
    %c6 = arith.constant 6 : index
    %6 = memref.load %arg2[%c0_6, %c6] : memref<6x8xf32, #tpu.memory_space<smem>>
    %c0_7 = arith.constant 0 : index
    %c7 = arith.constant 7 : index
    %7 = memref.load %arg2[%c0_7, %c7] : memref<6x8xf32, #tpu.memory_space<smem>>
    %c1_8 = arith.constant 1 : index
    %c0_9 = arith.constant 0 : index
    %8 = memref.load %arg2[%c1_8, %c0_9] : memref<6x8xf32, #tpu.memory_space<smem>>
    %c1_10 = arith.constant 1 : index
    %c1_11 = arith.constant 1 : index
    %9 = memref.load %arg2[%c1_10, %c1_11] : memref<6x8xf32, #tpu.memory_space<smem>>
    %c1_12 = arith.constant 1 : index
    %c2_13 = arith.constant 2 : index
    %10 = memref.load %arg2[%c1_12, %c2_13] : memref<6x8xf32, #tpu.memory_space<smem>>
    %c1_14 = arith.constant 1 : index
    %c3_15 = arith.constant 3 : index
    %11 = memref.load %arg2[%c1_14, %c3_15] : memref<6x8xf32, #tpu.memory_space<smem>>
    %c1_16 = arith.constant 1 : index
    %c4_17 = arith.constant 4 : index
    %12 = memref.load %arg2[%c1_16, %c4_17] : memref<6x8xf32, #tpu.memory_space<smem>>
    %c1_18 = arith.constant 1 : index
    %c5_19 = arith.constant 5 : index
    %13 = memref.load %arg2[%c1_18, %c5_19] : memref<6x8xf32, #tpu.memory_space<smem>>
    %c1_20 = arith.constant 1 : index
    %c6_21 = arith.constant 6 : index
    %14 = memref.load %arg2[%c1_20, %c6_21] : memref<6x8xf32, #tpu.memory_space<smem>>
    %c1_22 = arith.constant 1 : index
    %c7_23 = arith.constant 7 : index
    %15 = memref.load %arg2[%c1_22, %c7_23] : memref<6x8xf32, #tpu.memory_space<smem>>
    %c2_24 = arith.constant 2 : index
    %c0_25 = arith.constant 0 : index
    %16 = memref.load %arg2[%c2_24, %c0_25] : memref<6x8xf32, #tpu.memory_space<smem>>
    %c2_26 = arith.constant 2 : index
    %c1_27 = arith.constant 1 : index
    %17 = memref.load %arg2[%c2_26, %c1_27] : memref<6x8xf32, #tpu.memory_space<smem>>
    %c2_28 = arith.constant 2 : index
    %c2_29 = arith.constant 2 : index
    %18 = memref.load %arg2[%c2_28, %c2_29] : memref<6x8xf32, #tpu.memory_space<smem>>
    %c2_30 = arith.constant 2 : index
    %c3_31 = arith.constant 3 : index
    %19 = memref.load %arg2[%c2_30, %c3_31] : memref<6x8xf32, #tpu.memory_space<smem>>
    %c2_32 = arith.constant 2 : index
    %c4_33 = arith.constant 4 : index
    %20 = memref.load %arg2[%c2_32, %c4_33] : memref<6x8xf32, #tpu.memory_space<smem>>
    %c2_34 = arith.constant 2 : index
    %c5_35 = arith.constant 5 : index
    %21 = memref.load %arg2[%c2_34, %c5_35] : memref<6x8xf32, #tpu.memory_space<smem>>
    %c2_36 = arith.constant 2 : index
    %c6_37 = arith.constant 6 : index
    %22 = memref.load %arg2[%c2_36, %c6_37] : memref<6x8xf32, #tpu.memory_space<smem>>
    %c2_38 = arith.constant 2 : index
    %c7_39 = arith.constant 7 : index
    %23 = memref.load %arg2[%c2_38, %c7_39] : memref<6x8xf32, #tpu.memory_space<smem>>
    %c3_40 = arith.constant 3 : index
    %c0_41 = arith.constant 0 : index
    %24 = memref.load %arg2[%c3_40, %c0_41] : memref<6x8xf32, #tpu.memory_space<smem>>
    %c3_42 = arith.constant 3 : index
    %c1_43 = arith.constant 1 : index
    %25 = memref.load %arg2[%c3_42, %c1_43] : memref<6x8xf32, #tpu.memory_space<smem>>
    %c3_44 = arith.constant 3 : index
    %c2_45 = arith.constant 2 : index
    %26 = memref.load %arg2[%c3_44, %c2_45] : memref<6x8xf32, #tpu.memory_space<smem>>
    %c3_46 = arith.constant 3 : index
    %c3_47 = arith.constant 3 : index
    %27 = memref.load %arg2[%c3_46, %c3_47] : memref<6x8xf32, #tpu.memory_space<smem>>
    %c3_48 = arith.constant 3 : index
    %c4_49 = arith.constant 4 : index
    %28 = memref.load %arg2[%c3_48, %c4_49] : memref<6x8xf32, #tpu.memory_space<smem>>
    %c3_50 = arith.constant 3 : index
    %c5_51 = arith.constant 5 : index
    %29 = memref.load %arg2[%c3_50, %c5_51] : memref<6x8xf32, #tpu.memory_space<smem>>
    %c3_52 = arith.constant 3 : index
    %c6_53 = arith.constant 6 : index
    %30 = memref.load %arg2[%c3_52, %c6_53] : memref<6x8xf32, #tpu.memory_space<smem>>
    %c3_54 = arith.constant 3 : index
    %c7_55 = arith.constant 7 : index
    %31 = memref.load %arg2[%c3_54, %c7_55] : memref<6x8xf32, #tpu.memory_space<smem>>
    %c4_56 = arith.constant 4 : index
    %c0_57 = arith.constant 0 : index
    %32 = memref.load %arg2[%c4_56, %c0_57] : memref<6x8xf32, #tpu.memory_space<smem>>
    %c4_58 = arith.constant 4 : index
    %c1_59 = arith.constant 1 : index
    %33 = memref.load %arg2[%c4_58, %c1_59] : memref<6x8xf32, #tpu.memory_space<smem>>
    %c4_60 = arith.constant 4 : index
    %c2_61 = arith.constant 2 : index
    %34 = memref.load %arg2[%c4_60, %c2_61] : memref<6x8xf32, #tpu.memory_space<smem>>
    %c4_62 = arith.constant 4 : index
    %c3_63 = arith.constant 3 : index
    %35 = memref.load %arg2[%c4_62, %c3_63] : memref<6x8xf32, #tpu.memory_space<smem>>
    %c4_64 = arith.constant 4 : index
    %c4_65 = arith.constant 4 : index
    %36 = memref.load %arg2[%c4_64, %c4_65] : memref<6x8xf32, #tpu.memory_space<smem>>
    %c4_66 = arith.constant 4 : index
    %c5_67 = arith.constant 5 : index
    %37 = memref.load %arg2[%c4_66, %c5_67] : memref<6x8xf32, #tpu.memory_space<smem>>
    %c4_68 = arith.constant 4 : index
    %c6_69 = arith.constant 6 : index
    %38 = memref.load %arg2[%c4_68, %c6_69] : memref<6x8xf32, #tpu.memory_space<smem>>
    %c4_70 = arith.constant 4 : index
    %c7_71 = arith.constant 7 : index
    %39 = memref.load %arg2[%c4_70, %c7_71] : memref<6x8xf32, #tpu.memory_space<smem>>
    %c5_72 = arith.constant 5 : index
    %c0_73 = arith.constant 0 : index
    %40 = memref.load %arg2[%c5_72, %c0_73] : memref<6x8xf32, #tpu.memory_space<smem>>
    %c5_74 = arith.constant 5 : index
    %c1_75 = arith.constant 1 : index
    %41 = memref.load %arg2[%c5_74, %c1_75] : memref<6x8xf32, #tpu.memory_space<smem>>
    %c5_76 = arith.constant 5 : index
    %c2_77 = arith.constant 2 : index
    %42 = memref.load %arg2[%c5_76, %c2_77] : memref<6x8xf32, #tpu.memory_space<smem>>
    %c5_78 = arith.constant 5 : index
    %c3_79 = arith.constant 3 : index
    %43 = memref.load %arg2[%c5_78, %c3_79] : memref<6x8xf32, #tpu.memory_space<smem>>
    %c5_80 = arith.constant 5 : index
    %c4_81 = arith.constant 4 : index
    %44 = memref.load %arg2[%c5_80, %c4_81] : memref<6x8xf32, #tpu.memory_space<smem>>
    %c5_82 = arith.constant 5 : index
    %c5_83 = arith.constant 5 : index
    %45 = memref.load %arg2[%c5_82, %c5_83] : memref<6x8xf32, #tpu.memory_space<smem>>
    %c5_84 = arith.constant 5 : index
    %c6_85 = arith.constant 6 : index
    %46 = memref.load %arg2[%c5_84, %c6_85] : memref<6x8xf32, #tpu.memory_space<smem>>
    %c5_86 = arith.constant 5 : index
    %c7_87 = arith.constant 7 : index
    %47 = memref.load %arg2[%c5_86, %c7_87] : memref<6x8xf32, #tpu.memory_space<smem>>
    %c0_88 = arith.constant 0 : index
    %48 = memref.load %arg3[%c0_88] : memref<6xf32, #tpu.memory_space<smem>>
    %c1_89 = arith.constant 1 : index
    %49 = memref.load %arg3[%c1_89] : memref<6xf32, #tpu.memory_space<smem>>
    %c2_90 = arith.constant 2 : index
    %50 = memref.load %arg3[%c2_90] : memref<6xf32, #tpu.memory_space<smem>>
    %c3_91 = arith.constant 3 : index
    %51 = memref.load %arg3[%c3_91] : memref<6xf32, #tpu.memory_space<smem>>
    %c4_92 = arith.constant 4 : index
    %52 = memref.load %arg3[%c4_92] : memref<6xf32, #tpu.memory_space<smem>>
    %c5_93 = arith.constant 5 : index
    %53 = memref.load %arg3[%c5_93] : memref<6xf32, #tpu.memory_space<smem>>
    %c0_94 = arith.constant 0 : index
    %c0_95 = arith.constant 0 : index
    %54 = memref.load %arg4[%c0_94, %c0_95] : memref<4x6xf32, #tpu.memory_space<smem>>
    %c0_96 = arith.constant 0 : index
    %c1_97 = arith.constant 1 : index
    %55 = memref.load %arg4[%c0_96, %c1_97] : memref<4x6xf32, #tpu.memory_space<smem>>
    %c0_98 = arith.constant 0 : index
    %c2_99 = arith.constant 2 : index
    %56 = memref.load %arg4[%c0_98, %c2_99] : memref<4x6xf32, #tpu.memory_space<smem>>
    %c0_100 = arith.constant 0 : index
    %c3_101 = arith.constant 3 : index
    %57 = memref.load %arg4[%c0_100, %c3_101] : memref<4x6xf32, #tpu.memory_space<smem>>
    %c0_102 = arith.constant 0 : index
    %c4_103 = arith.constant 4 : index
    %58 = memref.load %arg4[%c0_102, %c4_103] : memref<4x6xf32, #tpu.memory_space<smem>>
    %c0_104 = arith.constant 0 : index
    %c5_105 = arith.constant 5 : index
    %59 = memref.load %arg4[%c0_104, %c5_105] : memref<4x6xf32, #tpu.memory_space<smem>>
    %c1_106 = arith.constant 1 : index
    %c0_107 = arith.constant 0 : index
    %60 = memref.load %arg4[%c1_106, %c0_107] : memref<4x6xf32, #tpu.memory_space<smem>>
    %c1_108 = arith.constant 1 : index
    %c1_109 = arith.constant 1 : index
    %61 = memref.load %arg4[%c1_108, %c1_109] : memref<4x6xf32, #tpu.memory_space<smem>>
    %c1_110 = arith.constant 1 : index
    %c2_111 = arith.constant 2 : index
    %62 = memref.load %arg4[%c1_110, %c2_111] : memref<4x6xf32, #tpu.memory_space<smem>>
    %c1_112 = arith.constant 1 : index
    %c3_113 = arith.constant 3 : index
    %63 = memref.load %arg4[%c1_112, %c3_113] : memref<4x6xf32, #tpu.memory_space<smem>>
    %c1_114 = arith.constant 1 : index
    %c4_115 = arith.constant 4 : index
    %64 = memref.load %arg4[%c1_114, %c4_115] : memref<4x6xf32, #tpu.memory_space<smem>>
    %c1_116 = arith.constant 1 : index
    %c5_117 = arith.constant 5 : index
    %65 = memref.load %arg4[%c1_116, %c5_117] : memref<4x6xf32, #tpu.memory_space<smem>>
    %c2_118 = arith.constant 2 : index
    %c0_119 = arith.constant 0 : index
    %66 = memref.load %arg4[%c2_118, %c0_119] : memref<4x6xf32, #tpu.memory_space<smem>>
    %c2_120 = arith.constant 2 : index
    %c1_121 = arith.constant 1 : index
    %67 = memref.load %arg4[%c2_120, %c1_121] : memref<4x6xf32, #tpu.memory_space<smem>>
    %c2_122 = arith.constant 2 : index
    %c2_123 = arith.constant 2 : index
    %68 = memref.load %arg4[%c2_122, %c2_123] : memref<4x6xf32, #tpu.memory_space<smem>>
    %c2_124 = arith.constant 2 : index
    %c3_125 = arith.constant 3 : index
    %69 = memref.load %arg4[%c2_124, %c3_125] : memref<4x6xf32, #tpu.memory_space<smem>>
    %c2_126 = arith.constant 2 : index
    %c4_127 = arith.constant 4 : index
    %70 = memref.load %arg4[%c2_126, %c4_127] : memref<4x6xf32, #tpu.memory_space<smem>>
    %c2_128 = arith.constant 2 : index
    %c5_129 = arith.constant 5 : index
    %71 = memref.load %arg4[%c2_128, %c5_129] : memref<4x6xf32, #tpu.memory_space<smem>>
    %c3_130 = arith.constant 3 : index
    %c0_131 = arith.constant 0 : index
    %72 = memref.load %arg4[%c3_130, %c0_131] : memref<4x6xf32, #tpu.memory_space<smem>>
    %c3_132 = arith.constant 3 : index
    %c1_133 = arith.constant 1 : index
    %73 = memref.load %arg4[%c3_132, %c1_133] : memref<4x6xf32, #tpu.memory_space<smem>>
    %c3_134 = arith.constant 3 : index
    %c2_135 = arith.constant 2 : index
    %74 = memref.load %arg4[%c3_134, %c2_135] : memref<4x6xf32, #tpu.memory_space<smem>>
    %c3_136 = arith.constant 3 : index
    %c3_137 = arith.constant 3 : index
    %75 = memref.load %arg4[%c3_136, %c3_137] : memref<4x6xf32, #tpu.memory_space<smem>>
    %c3_138 = arith.constant 3 : index
    %c4_139 = arith.constant 4 : index
    %76 = memref.load %arg4[%c3_138, %c4_139] : memref<4x6xf32, #tpu.memory_space<smem>>
    %c3_140 = arith.constant 3 : index
    %c5_141 = arith.constant 5 : index
    %77 = memref.load %arg4[%c3_140, %c5_141] : memref<4x6xf32, #tpu.memory_space<smem>>
    %c0_142 = arith.constant 0 : index
    %78 = memref.load %arg5[%c0_142] : memref<4xf32, #tpu.memory_space<smem>>
    %c1_143 = arith.constant 1 : index
    %79 = memref.load %arg5[%c1_143] : memref<4xf32, #tpu.memory_space<smem>>
    %c2_144 = arith.constant 2 : index
    %80 = memref.load %arg5[%c2_144] : memref<4xf32, #tpu.memory_space<smem>>
    %c3_145 = arith.constant 3 : index
    %81 = memref.load %arg5[%c3_145] : memref<4xf32, #tpu.memory_space<smem>>
    %c0_146 = arith.constant 0 : index
    %c0_147 = arith.constant 0 : index
    %82 = memref.load %arg6[%c0_146, %c0_147] : memref<1x4xf32, #tpu.memory_space<smem>>
    %c0_148 = arith.constant 0 : index
    %c1_149 = arith.constant 1 : index
    %83 = memref.load %arg6[%c0_148, %c1_149] : memref<1x4xf32, #tpu.memory_space<smem>>
    %c0_150 = arith.constant 0 : index
    %c2_151 = arith.constant 2 : index
    %84 = memref.load %arg6[%c0_150, %c2_151] : memref<1x4xf32, #tpu.memory_space<smem>>
    %c0_152 = arith.constant 0 : index
    %c3_153 = arith.constant 3 : index
    %85 = memref.load %arg6[%c0_152, %c3_153] : memref<1x4xf32, #tpu.memory_space<smem>>
    %c0_154 = arith.constant 0 : index
    %86 = memref.load %arg7[%c0_154] : memref<1xf32, #tpu.memory_space<smem>>
    %c0_i32 = arith.constant 0 : i32
    %c1_i32 = arith.constant 1 : i32
    %87 = arith.muli %c0_i32, %c1_i32 : i32
    %c0_i32_155 = arith.constant 0 : i32
    %88 = arith.addi %c0_i32_155, %87 : i32
    %c128_i32 = arith.constant 128 : i32
    %89 = arith.muli %88, %c128_i32 : i32
    %90 = tpu.assume_multiple %89, 128 : i32
    %c0_156 = arith.constant 0 : index
    %c0_157 = arith.constant 0 : index
    %91 = arith.index_cast %90 : i32 to index
    %92 = vector.load %arg1[%c0_156, %c0_157, %91] : memref<8x8x128xf32, #tpu.memory_space<vmem>>, vector<1x8x128xf32>
    %93 = vector.shape_cast %92 : vector<1x8x128xf32> to vector<8x128xf32>
    %c1_158 = arith.constant 1 : index
    %c0_159 = arith.constant 0 : index
    %94 = arith.index_cast %90 : i32 to index
    %95 = vector.load %arg1[%c1_158, %c0_159, %94] : memref<8x8x128xf32, #tpu.memory_space<vmem>>, vector<1x8x128xf32>
    %96 = vector.shape_cast %95 : vector<1x8x128xf32> to vector<8x128xf32>
    %c2_160 = arith.constant 2 : index
    %c0_161 = arith.constant 0 : index
    %97 = arith.index_cast %90 : i32 to index
    %98 = vector.load %arg1[%c2_160, %c0_161, %97] : memref<8x8x128xf32, #tpu.memory_space<vmem>>, vector<1x8x128xf32>
    %99 = vector.shape_cast %98 : vector<1x8x128xf32> to vector<8x128xf32>
    %c3_162 = arith.constant 3 : index
    %c0_163 = arith.constant 0 : index
    %100 = arith.index_cast %90 : i32 to index
    %101 = vector.load %arg1[%c3_162, %c0_163, %100] : memref<8x8x128xf32, #tpu.memory_space<vmem>>, vector<1x8x128xf32>
    %102 = vector.shape_cast %101 : vector<1x8x128xf32> to vector<8x128xf32>
    %c4_164 = arith.constant 4 : index
    %c0_165 = arith.constant 0 : index
    %103 = arith.index_cast %90 : i32 to index
    %104 = vector.load %arg1[%c4_164, %c0_165, %103] : memref<8x8x128xf32, #tpu.memory_space<vmem>>, vector<1x8x128xf32>
    %105 = vector.shape_cast %104 : vector<1x8x128xf32> to vector<8x128xf32>
    %c5_166 = arith.constant 5 : index
    %c0_167 = arith.constant 0 : index
    %106 = arith.index_cast %90 : i32 to index
    %107 = vector.load %arg1[%c5_166, %c0_167, %106] : memref<8x8x128xf32, #tpu.memory_space<vmem>>, vector<1x8x128xf32>
    %108 = vector.shape_cast %107 : vector<1x8x128xf32> to vector<8x128xf32>
    %c6_168 = arith.constant 6 : index
    %c0_169 = arith.constant 0 : index
    %109 = arith.index_cast %90 : i32 to index
    %110 = vector.load %arg1[%c6_168, %c0_169, %109] : memref<8x8x128xf32, #tpu.memory_space<vmem>>, vector<1x8x128xf32>
    %111 = vector.shape_cast %110 : vector<1x8x128xf32> to vector<8x128xf32>
    %c7_170 = arith.constant 7 : index
    %c0_171 = arith.constant 0 : index
    %112 = arith.index_cast %90 : i32 to index
    %113 = vector.load %arg1[%c7_170, %c0_171, %112] : memref<8x8x128xf32, #tpu.memory_space<vmem>>, vector<1x8x128xf32>
    %114 = vector.shape_cast %113 : vector<1x8x128xf32> to vector<8x128xf32>
    %115 = vector.broadcast %0 : f32 to vector<8x128xf32>
    %116 = arith.mulf %93, %115 : vector<8x128xf32>
    %117 = vector.broadcast %48 : f32 to vector<8x128xf32>
    %118 = arith.addf %116, %117 : vector<8x128xf32>
    %119 = vector.broadcast %1 : f32 to vector<8x128xf32>
    %120 = arith.mulf %96, %119 : vector<8x128xf32>
    %121 = arith.addf %118, %120 : vector<8x128xf32>
    %122 = vector.broadcast %2 : f32 to vector<8x128xf32>
    %123 = arith.mulf %99, %122 : vector<8x128xf32>
    %124 = arith.addf %121, %123 : vector<8x128xf32>
    %125 = vector.broadcast %3 : f32 to vector<8x128xf32>
    %126 = arith.mulf %102, %125 : vector<8x128xf32>
    %127 = arith.addf %124, %126 : vector<8x128xf32>
    %128 = vector.broadcast %4 : f32 to vector<8x128xf32>
    %129 = arith.mulf %105, %128 : vector<8x128xf32>
    %130 = arith.addf %127, %129 : vector<8x128xf32>
    %131 = vector.broadcast %5 : f32 to vector<8x128xf32>
    %132 = arith.mulf %108, %131 : vector<8x128xf32>
    %133 = arith.addf %130, %132 : vector<8x128xf32>
    %134 = vector.broadcast %6 : f32 to vector<8x128xf32>
    %135 = arith.mulf %111, %134 : vector<8x128xf32>
    %136 = arith.addf %133, %135 : vector<8x128xf32>
    %137 = vector.broadcast %7 : f32 to vector<8x128xf32>
    %138 = arith.mulf %114, %137 : vector<8x128xf32>
    %139 = arith.addf %136, %138 : vector<8x128xf32>
    %cst = arith.constant 0.000000e+00 : f32
    %140 = vector.broadcast %cst : f32 to vector<8x128xf32>
    %141 = arith.maximumf %139, %140 : vector<8x128xf32>
    %142 = vector.broadcast %8 : f32 to vector<8x128xf32>
    %143 = arith.mulf %93, %142 : vector<8x128xf32>
    %144 = vector.broadcast %49 : f32 to vector<8x128xf32>
    %145 = arith.addf %143, %144 : vector<8x128xf32>
    %146 = vector.broadcast %9 : f32 to vector<8x128xf32>
    %147 = arith.mulf %96, %146 : vector<8x128xf32>
    %148 = arith.addf %145, %147 : vector<8x128xf32>
    %149 = vector.broadcast %10 : f32 to vector<8x128xf32>
    %150 = arith.mulf %99, %149 : vector<8x128xf32>
    %151 = arith.addf %148, %150 : vector<8x128xf32>
    %152 = vector.broadcast %11 : f32 to vector<8x128xf32>
    %153 = arith.mulf %102, %152 : vector<8x128xf32>
    %154 = arith.addf %151, %153 : vector<8x128xf32>
    %155 = vector.broadcast %12 : f32 to vector<8x128xf32>
    %156 = arith.mulf %105, %155 : vector<8x128xf32>
    %157 = arith.addf %154, %156 : vector<8x128xf32>
    %158 = vector.broadcast %13 : f32 to vector<8x128xf32>
    %159 = arith.mulf %108, %158 : vector<8x128xf32>
    %160 = arith.addf %157, %159 : vector<8x128xf32>
    %161 = vector.broadcast %14 : f32 to vector<8x128xf32>
    %162 = arith.mulf %111, %161 : vector<8x128xf32>
    %163 = arith.addf %160, %162 : vector<8x128xf32>
    %164 = vector.broadcast %15 : f32 to vector<8x128xf32>
    %165 = arith.mulf %114, %164 : vector<8x128xf32>
    %166 = arith.addf %163, %165 : vector<8x128xf32>
    %cst_172 = arith.constant 0.000000e+00 : f32
    %167 = vector.broadcast %cst_172 : f32 to vector<8x128xf32>
    %168 = arith.maximumf %166, %167 : vector<8x128xf32>
    %169 = vector.broadcast %16 : f32 to vector<8x128xf32>
    %170 = arith.mulf %93, %169 : vector<8x128xf32>
    %171 = vector.broadcast %50 : f32 to vector<8x128xf32>
    %172 = arith.addf %170, %171 : vector<8x128xf32>
    %173 = vector.broadcast %17 : f32 to vector<8x128xf32>
    %174 = arith.mulf %96, %173 : vector<8x128xf32>
    %175 = arith.addf %172, %174 : vector<8x128xf32>
    %176 = vector.broadcast %18 : f32 to vector<8x128xf32>
    %177 = arith.mulf %99, %176 : vector<8x128xf32>
    %178 = arith.addf %175, %177 : vector<8x128xf32>
    %179 = vector.broadcast %19 : f32 to vector<8x128xf32>
    %180 = arith.mulf %102, %179 : vector<8x128xf32>
    %181 = arith.addf %178, %180 : vector<8x128xf32>
    %182 = vector.broadcast %20 : f32 to vector<8x128xf32>
    %183 = arith.mulf %105, %182 : vector<8x128xf32>
    %184 = arith.addf %181, %183 : vector<8x128xf32>
    %185 = vector.broadcast %21 : f32 to vector<8x128xf32>
    %186 = arith.mulf %108, %185 : vector<8x128xf32>
    %187 = arith.addf %184, %186 : vector<8x128xf32>
    %188 = vector.broadcast %22 : f32 to vector<8x128xf32>
    %189 = arith.mulf %111, %188 : vector<8x128xf32>
    %190 = arith.addf %187, %189 : vector<8x128xf32>
    %191 = vector.broadcast %23 : f32 to vector<8x128xf32>
    %192 = arith.mulf %114, %191 : vector<8x128xf32>
    %193 = arith.addf %190, %192 : vector<8x128xf32>
    %cst_173 = arith.constant 0.000000e+00 : f32
    %194 = vector.broadcast %cst_173 : f32 to vector<8x128xf32>
    %195 = arith.maximumf %193, %194 : vector<8x128xf32>
    %196 = vector.broadcast %24 : f32 to vector<8x128xf32>
    %197 = arith.mulf %93, %196 : vector<8x128xf32>
    %198 = vector.broadcast %51 : f32 to vector<8x128xf32>
    %199 = arith.addf %197, %198 : vector<8x128xf32>
    %200 = vector.broadcast %25 : f32 to vector<8x128xf32>
    %201 = arith.mulf %96, %200 : vector<8x128xf32>
    %202 = arith.addf %199, %201 : vector<8x128xf32>
    %203 = vector.broadcast %26 : f32 to vector<8x128xf32>
    %204 = arith.mulf %99, %203 : vector<8x128xf32>
    %205 = arith.addf %202, %204 : vector<8x128xf32>
    %206 = vector.broadcast %27 : f32 to vector<8x128xf32>
    %207 = arith.mulf %102, %206 : vector<8x128xf32>
    %208 = arith.addf %205, %207 : vector<8x128xf32>
    %209 = vector.broadcast %28 : f32 to vector<8x128xf32>
    %210 = arith.mulf %105, %209 : vector<8x128xf32>
    %211 = arith.addf %208, %210 : vector<8x128xf32>
    %212 = vector.broadcast %29 : f32 to vector<8x128xf32>
    %213 = arith.mulf %108, %212 : vector<8x128xf32>
    %214 = arith.addf %211, %213 : vector<8x128xf32>
    %215 = vector.broadcast %30 : f32 to vector<8x128xf32>
    %216 = arith.mulf %111, %215 : vector<8x128xf32>
    %217 = arith.addf %214, %216 : vector<8x128xf32>
    %218 = vector.broadcast %31 : f32 to vector<8x128xf32>
    %219 = arith.mulf %114, %218 : vector<8x128xf32>
    %220 = arith.addf %217, %219 : vector<8x128xf32>
    %cst_174 = arith.constant 0.000000e+00 : f32
    %221 = vector.broadcast %cst_174 : f32 to vector<8x128xf32>
    %222 = arith.maximumf %220, %221 : vector<8x128xf32>
    %223 = vector.broadcast %32 : f32 to vector<8x128xf32>
    %224 = arith.mulf %93, %223 : vector<8x128xf32>
    %225 = vector.broadcast %52 : f32 to vector<8x128xf32>
    %226 = arith.addf %224, %225 : vector<8x128xf32>
    %227 = vector.broadcast %33 : f32 to vector<8x128xf32>
    %228 = arith.mulf %96, %227 : vector<8x128xf32>
    %229 = arith.addf %226, %228 : vector<8x128xf32>
    %230 = vector.broadcast %34 : f32 to vector<8x128xf32>
    %231 = arith.mulf %99, %230 : vector<8x128xf32>
    %232 = arith.addf %229, %231 : vector<8x128xf32>
    %233 = vector.broadcast %35 : f32 to vector<8x128xf32>
    %234 = arith.mulf %102, %233 : vector<8x128xf32>
    %235 = arith.addf %232, %234 : vector<8x128xf32>
    %236 = vector.broadcast %36 : f32 to vector<8x128xf32>
    %237 = arith.mulf %105, %236 : vector<8x128xf32>
    %238 = arith.addf %235, %237 : vector<8x128xf32>
    %239 = vector.broadcast %37 : f32 to vector<8x128xf32>
    %240 = arith.mulf %108, %239 : vector<8x128xf32>
    %241 = arith.addf %238, %240 : vector<8x128xf32>
    %242 = vector.broadcast %38 : f32 to vector<8x128xf32>
    %243 = arith.mulf %111, %242 : vector<8x128xf32>
    %244 = arith.addf %241, %243 : vector<8x128xf32>
    %245 = vector.broadcast %39 : f32 to vector<8x128xf32>
    %246 = arith.mulf %114, %245 : vector<8x128xf32>
    %247 = arith.addf %244, %246 : vector<8x128xf32>
    %cst_175 = arith.constant 0.000000e+00 : f32
    %248 = vector.broadcast %cst_175 : f32 to vector<8x128xf32>
    %249 = arith.maximumf %247, %248 : vector<8x128xf32>
    %250 = vector.broadcast %40 : f32 to vector<8x128xf32>
    %251 = arith.mulf %93, %250 : vector<8x128xf32>
    %252 = vector.broadcast %53 : f32 to vector<8x128xf32>
    %253 = arith.addf %251, %252 : vector<8x128xf32>
    %254 = vector.broadcast %41 : f32 to vector<8x128xf32>
    %255 = arith.mulf %96, %254 : vector<8x128xf32>
    %256 = arith.addf %253, %255 : vector<8x128xf32>
    %257 = vector.broadcast %42 : f32 to vector<8x128xf32>
    %258 = arith.mulf %99, %257 : vector<8x128xf32>
    %259 = arith.addf %256, %258 : vector<8x128xf32>
    %260 = vector.broadcast %43 : f32 to vector<8x128xf32>
    %261 = arith.mulf %102, %260 : vector<8x128xf32>
    %262 = arith.addf %259, %261 : vector<8x128xf32>
    %263 = vector.broadcast %44 : f32 to vector<8x128xf32>
    %264 = arith.mulf %105, %263 : vector<8x128xf32>
    %265 = arith.addf %262, %264 : vector<8x128xf32>
    %266 = vector.broadcast %45 : f32 to vector<8x128xf32>
    %267 = arith.mulf %108, %266 : vector<8x128xf32>
    %268 = arith.addf %265, %267 : vector<8x128xf32>
    %269 = vector.broadcast %46 : f32 to vector<8x128xf32>
    %270 = arith.mulf %111, %269 : vector<8x128xf32>
    %271 = arith.addf %268, %270 : vector<8x128xf32>
    %272 = vector.broadcast %47 : f32 to vector<8x128xf32>
    %273 = arith.mulf %114, %272 : vector<8x128xf32>
    %274 = arith.addf %271, %273 : vector<8x128xf32>
    %cst_176 = arith.constant 0.000000e+00 : f32
    %275 = vector.broadcast %cst_176 : f32 to vector<8x128xf32>
    %276 = arith.maximumf %274, %275 : vector<8x128xf32>
    %277 = vector.broadcast %54 : f32 to vector<8x128xf32>
    %278 = arith.mulf %141, %277 : vector<8x128xf32>
    %279 = vector.broadcast %78 : f32 to vector<8x128xf32>
    %280 = arith.addf %278, %279 : vector<8x128xf32>
    %281 = vector.broadcast %55 : f32 to vector<8x128xf32>
    %282 = arith.mulf %168, %281 : vector<8x128xf32>
    %283 = arith.addf %280, %282 : vector<8x128xf32>
    %284 = vector.broadcast %56 : f32 to vector<8x128xf32>
    %285 = arith.mulf %195, %284 : vector<8x128xf32>
    %286 = arith.addf %283, %285 : vector<8x128xf32>
    %287 = vector.broadcast %57 : f32 to vector<8x128xf32>
    %288 = arith.mulf %222, %287 : vector<8x128xf32>
    %289 = arith.addf %286, %288 : vector<8x128xf32>
    %290 = vector.broadcast %58 : f32 to vector<8x128xf32>
    %291 = arith.mulf %249, %290 : vector<8x128xf32>
    %292 = arith.addf %289, %291 : vector<8x128xf32>
    %293 = vector.broadcast %59 : f32 to vector<8x128xf32>
    %294 = arith.mulf %276, %293 : vector<8x128xf32>
    %295 = arith.addf %292, %294 : vector<8x128xf32>
    %cst_177 = arith.constant 0.000000e+00 : f32
    %296 = vector.broadcast %cst_177 : f32 to vector<8x128xf32>
    %297 = arith.maximumf %295, %296 : vector<8x128xf32>
    %298 = vector.broadcast %60 : f32 to vector<8x128xf32>
    %299 = arith.mulf %141, %298 : vector<8x128xf32>
    %300 = vector.broadcast %79 : f32 to vector<8x128xf32>
    %301 = arith.addf %299, %300 : vector<8x128xf32>
    %302 = vector.broadcast %61 : f32 to vector<8x128xf32>
    %303 = arith.mulf %168, %302 : vector<8x128xf32>
    %304 = arith.addf %301, %303 : vector<8x128xf32>
    %305 = vector.broadcast %62 : f32 to vector<8x128xf32>
    %306 = arith.mulf %195, %305 : vector<8x128xf32>
    %307 = arith.addf %304, %306 : vector<8x128xf32>
    %308 = vector.broadcast %63 : f32 to vector<8x128xf32>
    %309 = arith.mulf %222, %308 : vector<8x128xf32>
    %310 = arith.addf %307, %309 : vector<8x128xf32>
    %311 = vector.broadcast %64 : f32 to vector<8x128xf32>
    %312 = arith.mulf %249, %311 : vector<8x128xf32>
    %313 = arith.addf %310, %312 : vector<8x128xf32>
    %314 = vector.broadcast %65 : f32 to vector<8x128xf32>
    %315 = arith.mulf %276, %314 : vector<8x128xf32>
    %316 = arith.addf %313, %315 : vector<8x128xf32>
    %cst_178 = arith.constant 0.000000e+00 : f32
    %317 = vector.broadcast %cst_178 : f32 to vector<8x128xf32>
    %318 = arith.maximumf %316, %317 : vector<8x128xf32>
    %319 = vector.broadcast %66 : f32 to vector<8x128xf32>
    %320 = arith.mulf %141, %319 : vector<8x128xf32>
    %321 = vector.broadcast %80 : f32 to vector<8x128xf32>
    %322 = arith.addf %320, %321 : vector<8x128xf32>
    %323 = vector.broadcast %67 : f32 to vector<8x128xf32>
    %324 = arith.mulf %168, %323 : vector<8x128xf32>
    %325 = arith.addf %322, %324 : vector<8x128xf32>
    %326 = vector.broadcast %68 : f32 to vector<8x128xf32>
    %327 = arith.mulf %195, %326 : vector<8x128xf32>
    %328 = arith.addf %325, %327 : vector<8x128xf32>
    %329 = vector.broadcast %69 : f32 to vector<8x128xf32>
    %330 = arith.mulf %222, %329 : vector<8x128xf32>
    %331 = arith.addf %328, %330 : vector<8x128xf32>
    %332 = vector.broadcast %70 : f32 to vector<8x128xf32>
    %333 = arith.mulf %249, %332 : vector<8x128xf32>
    %334 = arith.addf %331, %333 : vector<8x128xf32>
    %335 = vector.broadcast %71 : f32 to vector<8x128xf32>
    %336 = arith.mulf %276, %335 : vector<8x128xf32>
    %337 = arith.addf %334, %336 : vector<8x128xf32>
    %cst_179 = arith.constant 0.000000e+00 : f32
    %338 = vector.broadcast %cst_179 : f32 to vector<8x128xf32>
    %339 = arith.maximumf %337, %338 : vector<8x128xf32>
    %340 = vector.broadcast %72 : f32 to vector<8x128xf32>
    %341 = arith.mulf %141, %340 : vector<8x128xf32>
    %342 = vector.broadcast %81 : f32 to vector<8x128xf32>
    %343 = arith.addf %341, %342 : vector<8x128xf32>
    %344 = vector.broadcast %73 : f32 to vector<8x128xf32>
    %345 = arith.mulf %168, %344 : vector<8x128xf32>
    %346 = arith.addf %343, %345 : vector<8x128xf32>
    %347 = vector.broadcast %74 : f32 to vector<8x128xf32>
    %348 = arith.mulf %195, %347 : vector<8x128xf32>
    %349 = arith.addf %346, %348 : vector<8x128xf32>
    %350 = vector.broadcast %75 : f32 to vector<8x128xf32>
    %351 = arith.mulf %222, %350 : vector<8x128xf32>
    %352 = arith.addf %349, %351 : vector<8x128xf32>
    %353 = vector.broadcast %76 : f32 to vector<8x128xf32>
    %354 = arith.mulf %249, %353 : vector<8x128xf32>
    %355 = arith.addf %352, %354 : vector<8x128xf32>
    %356 = vector.broadcast %77 : f32 to vector<8x128xf32>
    %357 = arith.mulf %276, %356 : vector<8x128xf32>
    %358 = arith.addf %355, %357 : vector<8x128xf32>
    %cst_180 = arith.constant 0.000000e+00 : f32
    %359 = vector.broadcast %cst_180 : f32 to vector<8x128xf32>
    %360 = arith.maximumf %358, %359 : vector<8x128xf32>
    %361 = vector.broadcast %82 : f32 to vector<8x128xf32>
    %362 = arith.mulf %297, %361 : vector<8x128xf32>
    %363 = vector.broadcast %86 : f32 to vector<8x128xf32>
    %364 = arith.addf %362, %363 : vector<8x128xf32>
    %365 = vector.broadcast %83 : f32 to vector<8x128xf32>
    %366 = arith.mulf %318, %365 : vector<8x128xf32>
    %367 = arith.addf %364, %366 : vector<8x128xf32>
    %368 = vector.broadcast %84 : f32 to vector<8x128xf32>
    %369 = arith.mulf %339, %368 : vector<8x128xf32>
    %370 = arith.addf %367, %369 : vector<8x128xf32>
    %371 = vector.broadcast %85 : f32 to vector<8x128xf32>
    %372 = arith.mulf %360, %371 : vector<8x128xf32>
    %373 = arith.addf %370, %372 : vector<8x128xf32>
    %cst_181 = arith.constant 5.000000e-01 : f32
    %374 = vector.broadcast %cst_181 : f32 to vector<8x128xf32>
    %375 = arith.mulf %374, %373 : vector<8x128xf32>
    %376 = math.tanh %375 : vector<8x128xf32>
    %cst_182 = arith.constant 5.000000e-01 : f32
    %377 = vector.broadcast %cst_182 : f32 to vector<8x128xf32>
    %378 = arith.mulf %377, %376 : vector<8x128xf32>
    %cst_183 = arith.constant 5.000000e-01 : f32
    %379 = vector.broadcast %cst_183 : f32 to vector<8x128xf32>
    %380 = arith.addf %378, %379 : vector<8x128xf32>
    %c0_184 = arith.constant 0 : index
    %c0_185 = arith.constant 0 : index
    %381 = arith.index_cast %90 : i32 to index
    %382 = vector.load %arg8[%c0_184, %c0_185, %381] : memref<1x8x128xf32, #tpu.memory_space<vmem>>, vector<1x8x128xf32>
    %383 = vector.shape_cast %382 : vector<1x8x128xf32> to vector<8x128xf32>
    %384 = vector.shape_cast %380 : vector<8x128xf32> to vector<1x8x128xf32>
    tpu.vector_store %arg8[%c0_184, %c0_185, %381], %384 {strides = array<i32>} : memref<1x8x128xf32, #tpu.memory_space<vmem>>, vector<1x8x128xf32>,
    %c1_i32_186 = arith.constant 1 : i32
    return
  }
  func.func @transform_0(%arg0: i32) -> (i32, i32, i32) {
    %c0_i32 = arith.constant 0 : i32
    %c0_i32_0 = arith.constant 0 : i32
    %c0_i32_1 = arith.constant 0 : i32
    return %c0_i32, %c0_i32_0, %arg0 : i32, i32, i32
  }
  func.func @transform_1(%arg0: i32) -> (i32, i32) {
    %c0_i32 = arith.constant 0 : i32
    %c0_i32_0 = arith.constant 0 : i32
    %c0_i32_1 = arith.constant 0 : i32
    return %c0_i32, %c0_i32_0 : i32, i32
  }
  func.func @transform_2(%arg0: i32) -> i32 {
    %c0_i32 = arith.constant 0 : i32
    %c0_i32_0 = arith.constant 0 : i32
    return %c0_i32 : i32
  }
  func.func @transform_3(%arg0: i32) -> (i32, i32) {
    %c0_i32 = arith.constant 0 : i32
    %c0_i32_0 = arith.constant 0 : i32
    %c0_i32_1 = arith.constant 0 : i32
    return %c0_i32, %c0_i32_0 : i32, i32
  }
  func.func @transform_4(%arg0: i32) -> i32 {
    %c0_i32 = arith.constant 0 : i32
    %c0_i32_0 = arith.constant 0 : i32
    return %c0_i32 : i32
  }
  func.func @transform_5(%arg0: i32) -> (i32, i32) {
    %c0_i32 = arith.constant 0 : i32
    %c0_i32_0 = arith.constant 0 : i32
    %c0_i32_1 = arith.constant 0 : i32
    return %c0_i32, %c0_i32_0 : i32, i32
  }
  func.func @transform_6(%arg0: i32) -> i32 {
    %c0_i32 = arith.constant 0 : i32
    %c0_i32_0 = arith.constant 0 : i32
    return %c0_i32 : i32
  }
  func.func @transform_7(%arg0: i32) -> (i32, i32, i32) {
    %c0_i32 = arith.constant 0 : i32
    %c0_i32_0 = arith.constant 0 : i32
    %c0_i32_1 = arith.constant 0 : i32
    return %c0_i32, %c0_i32_0, %arg0 : i32, i32, i32
  }
}

</mosaic_0001>

<llo_original>
// kernel: tpu_custom_call.1
$region0: #{tpu_custom_call.1}
  #allocation0 [shape = 'u32[]', space=smem, size = 0x4, offset = 0x4, fixed_abs, tag = 'smem constant byte address 0x4 - core index']
  #allocation1 [shape = 'u32[144,128]{1,0:T(1,128)}', space=vmem, size = 0x12000, scoped, tag = 'internal scratch']
  #allocation2 [shape = 'f32[1]{0:T(128)S(6)}', space=smem, size = 0x200, scoped, tag = 'scoped memory for tpu_custom_call.1']
  %s0 = inlined_call_operand.hbm [shape: f32[8,8,128], index: 0, kind: input, shape index: {}]
  %s1 = inlined_call_operand.hbm [shape: f32[6,8], index: 1, kind: input, shape index: {}]
  %s2 = inlined_call_operand.vmem [shape: f32[6], index: 2, kind: input, shape index: {}]
  %s3 = inlined_call_operand.vmem [shape: f32[4,6], index: 3, kind: input, shape index: {}]
  %s4 = inlined_call_operand.vmem [shape: f32[4], index: 4, kind: input, shape index: {}]
  %s5 = inlined_call_operand.vmem [shape: f32[1,4], index: 5, kind: input, shape index: {}]
  %s6 = inlined_call_operand.<no memory space> [shape: f32[1], index: 6, kind: input, shape index: {}]
  %s7 = inlined_call_operand.hbm [shape: f32[1,8,128], index: 7, kind: output, shape index: {}]
  %s8 = sld [smem:[#allocation0]]
  $region62: #{tpu_custom_call.1} parent=0
    _
  %s10 = ssub.s32 1, %s8
  %s11 = scalar_select 0, %s10, %s8
  %12 = sst [smem:[#allocation2]] %s6
  $region1: #{tpu_custom_call.1} parent=0
    #allocation3 [shape = 'u8[32768]{0}', space=vmem, size = 0x8000, scoped, tag = 'input window, operand 0, single buffered']
    #allocation4 [shape = 's32[1]{0}', space=sflag, size = 0x4, scoped, tag = 'scoped memory for tpu_custom_call.1']
    #allocation5 [shape = 's32[1]{0}', space=sflag, size = 0x4, scoped, tag = 'scoped memory for tpu_custom_call.1']
    #allocation6 [shape = 's32[1]{0}', space=sflag, size = 0x4, scoped, tag = 'scoped memory for tpu_custom_call.1']
    #allocation7 [shape = 's32[1]{0}', space=sflag, size = 0x4, scoped, tag = 'scoped memory for tpu_custom_call.1']
    #allocation8 [shape = 'u8[4096]{0}', space=smem, size = 0x1000, scoped, tag = 'input window, operand 1, single buffered']
    #allocation9 [shape = 'u8[512]{0}', space=smem, size = 0x200, scoped, tag = 'input window, operand 2, single buffered']
    #allocation10 [shape = 'u8[2048]{0}', space=smem, size = 0x800, scoped, tag = 'input window, operand 3, single buffered']
    #allocation11 [shape = 's32[1]{0}', space=sflag, size = 0x4, scoped, tag = 'scoped memory for tpu_custom_call.1']
    #allocation12 [shape = 'u8[512]{0}', space=smem, size = 0x200, scoped, tag = 'input window, operand 4, single buffered']
    #allocation13 [shape = 'u8[512]{0}', space=smem, size = 0x200, scoped, tag = 'input window, operand 5, single buffered']
    #allocation14 [shape = 's32[1]{0}', space=sflag, size = 0x4, scoped, tag = 'scoped memory for tpu_custom_call.1']
    #allocation15 [shape = 'u8[4096]{0}', space=vmem, size = 0x1000, scoped, tag = 'output window, operand 0, single buffered']
    %13 = vsyncpa [#allocation4], 0
    %14 = vsyncpa [#allocation6], 0
    %15 = vsyncpa [#allocation7], 0
    %16 = vsyncpa [#allocation11], 0
    %17 = vsyncpa [#allocation14], 0
    %18 = vsyncpa [#allocation5], 0
    // Predicated region
    $region2: #{tpu_custom_call.1} parent=1 // pred_check
      _
    $region3: #{tpu_custom_call.1} parent=1 // pred_check_branch
      %20 = sbr.rel (0) target = $region5
    $region4: #{tpu_custom_call.1} parent=1 // pred_region
      %s22 = ssub.s32 1024, 1024
      %23 = vsyncadd [#allocation4], %s22
      %s24 = sshll.u32 [#allocation3], 4
      %s25 = int_to_ptr.vmem [resolvable:$true] %s24
      %30 = dma.hbm_to_vmem [thread:$0]  %s0, 1024, %s25, [#allocation4], 128, 128, 8
    $region5: #{tpu_custom_call.1} parent=1 // pred_fallthru
      _
    // Predicated region
    $region6: #{tpu_custom_call.1} parent=1 // pred_check
      _
    $region7: #{tpu_custom_call.1} parent=1 // pred_check_branch
      %32 = sbr.rel (0) target = $region9
    $region8: #{tpu_custom_call.1} parent=1 // pred_region
      %s34 = ssub.s32 128, 128
      %35 = vsyncadd [#allocation6], %s34
      %38 = dma.hbm_to_smem %s1, 128, [#allocation8], [#allocation6]
    $region9: #{tpu_custom_call.1} parent=1 // pred_fallthru
      _
    // Predicated region
    $region10: #{tpu_custom_call.1} parent=1 // pred_check
      _
    $region11: #{tpu_custom_call.1} parent=1 // pred_check_branch
      %40 = sbr.rel (0) target = $region13
    $region12: #{tpu_custom_call.1} parent=1 // pred_region
      %s42 = ssub.s32 16, 16
      %43 = vsyncadd [#allocation7], %s42
      %s45 = sshll.u32 %s2, 4
      %s46 = int_to_ptr.vmem [resolvable:$true] %s45
      %48 = dma.vmem_to_smem %s46, 16, [#allocation9], [#allocation7]
    $region13: #{tpu_custom_call.1} parent=1 // pred_fallthru
      _
    // Predicated region
    $region14: #{tpu_custom_call.1} parent=1 // pred_check
      _
    $region15: #{tpu_custom_call.1} parent=1 // pred_check_branch
      %50 = sbr.rel (0) target = $region17
    $region16: #{tpu_custom_call.1} parent=1 // pred_region
      %s52 = ssub.s32 64, 64
      %53 = vsyncadd [#allocation11], %s52
      %s55 = sshll.u32 %s3, 4
      %s56 = int_to_ptr.vmem [resolvable:$true] %s55
      %58 = dma.vmem_to_smem %s56, 64, [#allocation10], [#allocation11]
    $region17: #{tpu_custom_call.1} parent=1 // pred_fallthru
      _
    // Predicated region
    $region18: #{tpu_custom_call.1} parent=1 // pred_check
      _
    $region19: #{tpu_custom_call.1} parent=1 // pred_check_branch
      %60 = sbr.rel (0) target = $region21
    $region20: #{tpu_custom_call.1} parent=1 // pred_region
      %s62 = ssub.s32 16, 16
      %63 = vsyncadd [#allocation11], %s62
      %s65 = sshll.u32 %s4, 4
      %s66 = int_to_ptr.vmem [resolvable:$true] %s65
      %68 = dma.vmem_to_smem %s66, 16, [#allocation12], [#allocation11]
    $region21: #{tpu_custom_call.1} parent=1 // pred_fallthru
      _
    // Predicated region
    $region22: #{tpu_custom_call.1} parent=1 // pred_check
      _
    $region23: #{tpu_custom_call.1} parent=1 // pred_check_branch
      %70 = sbr.rel (0) target = $region25
    $region24: #{tpu_custom_call.1} parent=1 // pred_region
      %s72 = ssub.s32 16, 16
      %73 = vsyncadd [#allocation14], %s72
      %s75 = sshll.u32 %s5, 4
      %s76 = int_to_ptr.vmem [resolvable:$true] %s75
      %78 = dma.vmem_to_smem %s76, 16, [#allocation13], [#allocation14]
    $region25: #{tpu_custom_call.1} parent=1 // pred_fallthru
      _
    // Predicated region
    $region26: #{tpu_custom_call.1} parent=1 // pred_check
      _
    $region27: #{tpu_custom_call.1} parent=1 // pred_check_branch
      %80 = sbr.rel (0) target = $region29
    $region28: #{tpu_custom_call.1} parent=1 // pred_region
      _
    $region29: #{tpu_custom_call.1} parent=1 // pred_fallthru
      _
    // Predicated region
    $region30: #{tpu_custom_call.1} parent=1 // pred_check
      _
    $region31: #{tpu_custom_call.1} parent=1 // pred_check_branch
      %82 = sbr.rel (0) target = $region33
    $region32: #{tpu_custom_call.1} parent=1 // pred_region
      %83 = dma.done [#allocation4], 1024
    $region33: #{tpu_custom_call.1} parent=1 // pred_fallthru
      _
    // Predicated region
    $region34: #{tpu_custom_call.1} parent=1 // pred_check
      _
    $region35: #{tpu_custom_call.1} parent=1 // pred_check_branch
      %85 = sbr.rel (0) target = $region37
    $region36: #{tpu_custom_call.1} parent=1 // pred_region
      %86 = dma.done [#allocation6], 128
    $region37: #{tpu_custom_call.1} parent=1 // pred_fallthru
      _
    // Predicated region
    $region38: #{tpu_custom_call.1} parent=1 // pred_check
      _
    $region39: #{tpu_custom_call.1} parent=1 // pred_check_branch
      %88 = sbr.rel (0) target = $region41
    $region40: #{tpu_custom_call.1} parent=1 // pred_region
      %89 = dma.done [#allocation7], 16
    $region41: #{tpu_custom_call.1} parent=1 // pred_fallthru
      _
    // Predicated region
    $region42: #{tpu_custom_call.1} parent=1 // pred_check
      _
    $region43: #{tpu_custom_call.1} parent=1 // pred_check_branch
      %91 = sbr.rel (0) target = $region45
    $region44: #{tpu_custom_call.1} parent=1 // pred_region
      %92 = dma.done [#allocation11], 64
    $region45: #{tpu_custom_call.1} parent=1 // pred_fallthru
      _
    // Predicated region
    $region46: #{tpu_custom_call.1} parent=1 // pred_check
      _
    $region47: #{tpu_custom_call.1} parent=1 // pred_check_branch
      %94 = sbr.rel (0) target = $region49
    $region48: #{tpu_custom_call.1} parent=1 // pred_region
      %95 = dma.done [#allocation11], 16
    $region49: #{tpu_custom_call.1} parent=1 // pred_fallthru
      _
    // Predicated region
    $region50: #{tpu_custom_call.1} parent=1 // pred_check
      _
    $region51: #{tpu_custom_call.1} parent=1 // pred_check_branch
      %97 = sbr.rel (0) target = $region53
    $region52: #{tpu_custom_call.1} parent=1 // pred_region
      %98 = dma.done [#allocation14], 16
    $region53: #{tpu_custom_call.1} parent=1 // pred_fallthru
      _
    %99 = sfence
    %s100 = sld [smem:[#allocation8]]
    %s101 = sld [smem:[#allocation8 + $0x1]]
    %s102 = sld [smem:[#allocation8 + $0x2]]
    %s103 = sld [smem:[#allocation8 + $0x3]]
    %s104 = sld [smem:[#allocation8 + $0x4]]
    %s105 = sld [smem:[#allocation8 + $0x5]]
    %s106 = sld [smem:[#allocation8 + $0x6]]
    %s107 = sld [smem:[#allocation8 + $0x7]]
    %s108 = sld [smem:[#allocation8 + $0x80]]
    %s109 = sld [smem:[#allocation8 + $0x81]]
    %s110 = sld [smem:[#allocation8 + $0x82]]
    %s111 = sld [smem:[#allocation8 + $0x83]]
    %s112 = sld [smem:[#allocation8 + $0x84]]
    %s113 = sld [smem:[#allocation8 + $0x85]]
    %s114 = sld [smem:[#allocation8 + $0x86]]
    %s115 = sld [smem:[#allocation8 + $0x87]]
    %s116 = sld [smem:[#allocation8 + $0x100]]
    %s117 = sld [smem:[#allocation8 + $0x101]]
    %s118 = sld [smem:[#allocation8 + $0x102]]
    %s119 = sld [smem:[#allocation8 + $0x103]]
    %s120 = sld [smem:[#allocation8 + $0x104]]
    %s121 = sld [smem:[#allocation8 + $0x105]]
    %s122 = sld [smem:[#allocation8 + $0x106]]
    %s123 = sld [smem:[#allocation8 + $0x107]]
    %s124 = sld [smem:[#allocation8 + $0x180]]
    %s125 = sld [smem:[#allocation8 + $0x181]]
    %s126 = sld [smem:[#allocation8 + $0x182]]
    %s127 = sld [smem:[#allocation8 + $0x183]]
    %s128 = sld [smem:[#allocation8 + $0x184]]
    %s129 = sld [smem:[#allocation8 + $0x185]]
    %s130 = sld [smem:[#allocation8 + $0x186]]
    %s131 = sld [smem:[#allocation8 + $0x187]]
    %s132 = sld [smem:[#allocation8 + $0x200]]
    %s133 = sld [smem:[#allocation8 + $0x201]]
    %s134 = sld [smem:[#allocation8 + $0x202]]
    %s135 = sld [smem:[#allocation8 + $0x203]]
    %s136 = sld [smem:[#allocation8 + $0x204]]
    %s137 = sld [smem:[#allocation8 + $0x205]]
    %s138 = sld [smem:[#allocation8 + $0x206]]
    %s139 = sld [smem:[#allocation8 + $0x207]]
    %s140 = sld [smem:[#allocation8 + $0x280]]
    %s141 = sld [smem:[#allocation8 + $0x281]]
    %s142 = sld [smem:[#allocation8 + $0x282]]
    %s143 = sld [smem:[#allocation8 + $0x283]]
    %s144 = sld [smem:[#allocation8 + $0x284]]
    %s145 = sld [smem:[#allocation8 + $0x285]]
    %s146 = sld [smem:[#allocation8 + $0x286]]
    %s147 = sld [smem:[#allocation8 + $0x287]]
    %s148 = sld [smem:[#allocation9]]
    %s149 = sld [smem:[#allocation9 + $0x1]]
    %s150 = sld [smem:[#allocation9 + $0x2]]
    %s151 = sld [smem:[#allocation9 + $0x3]]
    %s152 = sld [smem:[#allocation9 + $0x4]]
    %s153 = sld [smem:[#allocation9 + $0x5]]
    %s154 = sld [smem:[#allocation10]]
    %s155 = sld [smem:[#allocation10 + $0x1]]
    %s156 = sld [smem:[#allocation10 + $0x2]]
    %s157 = sld [smem:[#allocation10 + $0x3]]
    %s158 = sld [smem:[#allocation10 + $0x4]]
    %s159 = sld [smem:[#allocation10 + $0x5]]
    %s160 = sld [smem:[#allocation10 + $0x80]]
    %s161 = sld [smem:[#allocation10 + $0x81]]
    %s162 = sld [smem:[#allocation10 + $0x82]]
    %s163 = sld [smem:[#allocation10 + $0x83]]
    %s164 = sld [smem:[#allocation10 + $0x84]]
    %s165 = sld [smem:[#allocation10 + $0x85]]
    %s166 = sld [smem:[#allocation10 + $0x100]]
    %s167 = sld [smem:[#allocation10 + $0x101]]
    %s168 = sld [smem:[#allocation10 + $0x102]]
    %s169 = sld [smem:[#allocation10 + $0x103]]
    %s170 = sld [smem:[#allocation10 + $0x104]]
    %s171 = sld [smem:[#allocation10 + $0x105]]
    %s172 = sld [smem:[#allocation10 + $0x180]]
    %s173 = sld [smem:[#allocation10 + $0x181]]
    %s174 = sld [smem:[#allocation10 + $0x182]]
    %s175 = sld [smem:[#allocation10 + $0x183]]
    %s176 = sld [smem:[#allocation10 + $0x184]]
    %s177 = sld [smem:[#allocation10 + $0x185]]
    %s178 = sld [smem:[#allocation12]]
    %s179 = sld [smem:[#allocation12 + $0x1]]
    %s180 = sld [smem:[#allocation12 + $0x2]]
    %s181 = sld [smem:[#allocation12 + $0x3]]
    %s182 = sld [smem:[#allocation13]]
    %s183 = sld [smem:[#allocation13 + $0x1]]
    %s184 = sld [smem:[#allocation13 + $0x2]]
    %s185 = sld [smem:[#allocation13 + $0x3]]
    %s186 = sld [smem:[#allocation2]]
    %v187 = vld [vmem:[#allocation3] sm:$0xff]
    %s188 = sadd.s32 0, 8
    %s189 = scalar_lea.vmem [#allocation3], %s188
    %v190 = vld [vmem:[%s189] sm:$0xff]
    %s191 = sadd.s32 0, 16
    %s192 = scalar_lea.vmem [#allocation3], %s191
    %v193 = vld [vmem:[%s192] sm:$0xff]
    %s194 = sadd.s32 0, 24
    %s195 = scalar_lea.vmem [#allocation3], %s194
    %v196 = vld [vmem:[%s195] sm:$0xff]
    %s197 = sadd.s32 0, 32
    %s198 = scalar_lea.vmem [#allocation3], %s197
    %v199 = vld [vmem:[%s198] sm:$0xff]
    %s200 = sadd.s32 0, 40
    %s201 = scalar_lea.vmem [#allocation3], %s200
    %v202 = vld [vmem:[%s201] sm:$0xff]
    %s203 = sadd.s32 0, 48
    %s204 = scalar_lea.vmem [#allocation3], %s203
    %v205 = vld [vmem:[%s204] sm:$0xff]
    %s206 = sadd.s32 0, 56
    %s207 = scalar_lea.vmem [#allocation3], %s206
    %v208 = vld [vmem:[%s207] sm:$0xff]
    %v209 = vstv %s100
    %v210 = vmul.f32 %v187, %v209
    %v211 = vstv %s148
    %v212 = vadd.f32 %v210, %v211
    %v213 = vstv %s101
    %v214 = vmul.f32 %v190, %v213
    %v215 = vadd.f32 %v212, %v214
    %v216 = vstv %s102
    %v217 = vmul.f32 %v193, %v216
    %v218 = vadd.f32 %v215, %v217
    %v219 = vstv %s103
    %v220 = vmul.f32 %v196, %v219
    %v221 = vadd.f32 %v218, %v220
    %v222 = vstv %s104
    %v223 = vmul.f32 %v199, %v222
    %v224 = vadd.f32 %v221, %v223
    %v225 = vstv %s105
    %v226 = vmul.f32 %v202, %v225
    %v227 = vadd.f32 %v224, %v226
    %v228 = vstv %s106
    %v229 = vmul.f32 %v205, %v228
    %v230 = vadd.f32 %v227, %v229
    %v231 = vstv %s107
    %v232 = vmul.f32 %v208, %v231
    %v233 = vadd.f32 %v230, %v232
    %v234 = vmax.f32 %v233, 0.0
    %v235 = vstv %s108
    %v236 = vmul.f32 %v187, %v235
    %v237 = vstv %s149
    %v238 = vadd.f32 %v236, %v237
    %v239 = vstv %s109
    %v240 = vmul.f32 %v190, %v239
    %v241 = vadd.f32 %v238, %v240
    %v242 = vstv %s110
    %v243 = vmul.f32 %v193, %v242
    %v244 = vadd.f32 %v241, %v243
    %v245 = vstv %s111
    %v246 = vmul.f32 %v196, %v245
    %v247 = vadd.f32 %v244, %v246
    %v248 = vstv %s112
    %v249 = vmul.f32 %v199, %v248
    %v250 = vadd.f32 %v247, %v249
    %v251 = vstv %s113
    %v252 = vmul.f32 %v202, %v251
    %v253 = vadd.f32 %v250, %v252
    %v254 = vstv %s114
    %v255 = vmul.f32 %v205, %v254
    %v256 = vadd.f32 %v253, %v255
    %v257 = vstv %s115
    %v258 = vmul.f32 %v208, %v257
    %v259 = vadd.f32 %v256, %v258
    %v260 = vmax.f32 %v259, 0.0
    %v261 = vstv %s116
    %v262 = vmul.f32 %v187, %v261
    %v263 = vstv %s150
    %v264 = vadd.f32 %v262, %v263
    %v265 = vstv %s117
    %v266 = vmul.f32 %v190, %v265
    %v267 = vadd.f32 %v264, %v266
    %v268 = vstv %s118
    %v269 = vmul.f32 %v193, %v268
    %v270 = vadd.f32 %v267, %v269
    %v271 = vstv %s119
    %v272 = vmul.f32 %v196, %v271
    %v273 = vadd.f32 %v270, %v272
    %v274 = vstv %s120
    %v275 = vmul.f32 %v199, %v274
    %v276 = vadd.f32 %v273, %v275
    %v277 = vstv %s121
    %v278 = vmul.f32 %v202, %v277
    %v279 = vadd.f32 %v276, %v278
    %v280 = vstv %s122
    %v281 = vmul.f32 %v205, %v280
    %v282 = vadd.f32 %v279, %v281
    %v283 = vstv %s123
    %v284 = vmul.f32 %v208, %v283
    %v285 = vadd.f32 %v282, %v284
    %v286 = vmax.f32 %v285, 0.0
    %v287 = vstv %s124
    %v288 = vmul.f32 %v187, %v287
    %v289 = vstv %s151
    %v290 = vadd.f32 %v288, %v289
    %v291 = vstv %s125
    %v292 = vmul.f32 %v190, %v291
    %v293 = vadd.f32 %v290, %v292
    %v294 = vstv %s126
    %v295 = vmul.f32 %v193, %v294
    %v296 = vadd.f32 %v293, %v295
    %v297 = vstv %s127
    %v298 = vmul.f32 %v196, %v297
    %v299 = vadd.f32 %v296, %v298
    %v300 = vstv %s128
    %v301 = vmul.f32 %v199, %v300
    %v302 = vadd.f32 %v299, %v301
    %v303 = vstv %s129
    %v304 = vmul.f32 %v202, %v303
    %v305 = vadd.f32 %v302, %v304
    %v306 = vstv %s130
    %v307 = vmul.f32 %v205, %v306
    %v308 = vadd.f32 %v305, %v307
    %v309 = vstv %s131
    %v310 = vmul.f32 %v208, %v309
    %v311 = vadd.f32 %v308, %v310
    %v312 = vmax.f32 %v311, 0.0
    %v313 = vstv %s132
    %v314 = vmul.f32 %v187, %v313
    %v315 = vstv %s152
    %v316 = vadd.f32 %v314, %v315
    %v317 = vstv %s133
    %v318 = vmul.f32 %v190, %v317
    %v319 = vadd.f32 %v316, %v318
    %v320 = vstv %s134
    %v321 = vmul.f32 %v193, %v320
    %v322 = vadd.f32 %v319, %v321
    %v323 = vstv %s135
    %v324 = vmul.f32 %v196, %v323
    %v325 = vadd.f32 %v322, %v324
    %v326 = vstv %s136
    %v327 = vmul.f32 %v199, %v326
    %v328 = vadd.f32 %v325, %v327
    %v329 = vstv %s137
    %v330 = vmul.f32 %v202, %v329
    %v331 = vadd.f32 %v328, %v330
    %v332 = vstv %s138
    %v333 = vmul.f32 %v205, %v332
    %v334 = vadd.f32 %v331, %v333
    %v335 = vstv %s139
    %v336 = vmul.f32 %v208, %v335
    %v337 = vadd.f32 %v334, %v336
    %v338 = vmax.f32 %v337, 0.0
    %v339 = vstv %s140
    %v340 = vmul.f32 %v187, %v339
    %v341 = vstv %s153
    %v342 = vadd.f32 %v340, %v341
    %v343 = vstv %s141
    %v344 = vmul.f32 %v190, %v343
    %v345 = vadd.f32 %v342, %v344
    %v346 = vstv %s142
    %v347 = vmul.f32 %v193, %v346
    %v348 = vadd.f32 %v345, %v347
    %v349 = vstv %s143
    %v350 = vmul.f32 %v196, %v349
    %v351 = vadd.f32 %v348, %v350
    %v352 = vstv %s144
    %v353 = vmul.f32 %v199, %v352
    %v354 = vadd.f32 %v351, %v353
    %v355 = vstv %s145
    %v356 = vmul.f32 %v202, %v355
    %v357 = vadd.f32 %v354, %v356
    %v358 = vstv %s146
    %v359 = vmul.f32 %v205, %v358
    %v360 = vadd.f32 %v357, %v359
    %v361 = vstv %s147
    %v362 = vmul.f32 %v208, %v361
    %v363 = vadd.f32 %v360, %v362
    %v364 = vmax.f32 %v363, 0.0
    %v365 = vstv %s154
    %v366 = vmul.f32 %v234, %v365
    %v367 = vstv %s178
    %v368 = vadd.f32 %v366, %v367
    %v369 = vstv %s155
    %v370 = vmul.f32 %v260, %v369
    %v371 = vadd.f32 %v368, %v370
    %v372 = vstv %s156
    %v373 = vmul.f32 %v286, %v372
    %v374 = vadd.f32 %v371, %v373
    %v375 = vstv %s157
    %v376 = vmul.f32 %v312, %v375
    %v377 = vadd.f32 %v374, %v376
    %v378 = vstv %s158
    %v379 = vmul.f32 %v338, %v378
    %v380 = vadd.f32 %v377, %v379
    %v381 = vstv %s159
    %v382 = vmul.f32 %v364, %v381
    %v383 = vadd.f32 %v380, %v382
    %v384 = vmax.f32 %v383, 0.0
    %v385 = vstv %s160
    %v386 = vmul.f32 %v234, %v385
    %v387 = vstv %s179
    %v388 = vadd.f32 %v386, %v387
    %v389 = vstv %s161
    %v390 = vmul.f32 %v260, %v389
    %v391 = vadd.f32 %v388, %v390
    %v392 = vstv %s162
    %v393 = vmul.f32 %v286, %v392
    %v394 = vadd.f32 %v391, %v393
    %v395 = vstv %s163
    %v396 = vmul.f32 %v312, %v395
    %v397 = vadd.f32 %v394, %v396
    %v398 = vstv %s164
    %v399 = vmul.f32 %v338, %v398
    %v400 = vadd.f32 %v397, %v399
    %v401 = vstv %s165
    %v402 = vmul.f32 %v364, %v401
    %v403 = vadd.f32 %v400, %v402
    %v404 = vmax.f32 %v403, 0.0
    %v405 = vstv %s166
    %v406 = vmul.f32 %v234, %v405
    %v407 = vstv %s180
    %v408 = vadd.f32 %v406, %v407
    %v409 = vstv %s167
    %v410 = vmul.f32 %v260, %v409
    %v411 = vadd.f32 %v408, %v410
    %v412 = vstv %s168
    %v413 = vmul.f32 %v286, %v412
    %v414 = vadd.f32 %v411, %v413
    %v415 = vstv %s169
    %v416 = vmul.f32 %v312, %v415
    %v417 = vadd.f32 %v414, %v416
    %v418 = vstv %s170
    %v419 = vmul.f32 %v338, %v418
    %v420 = vadd.f32 %v417, %v419
    %v421 = vstv %s171
    %v422 = vmul.f32 %v364, %v421
    %v423 = vadd.f32 %v420, %v422
    %v424 = vmax.f32 %v423, 0.0
    %v425 = vstv %s172
    %v426 = vmul.f32 %v234, %v425
    %v427 = vstv %s181
    %v428 = vadd.f32 %v426, %v427
    %v429 = vstv %s173
    %v430 = vmul.f32 %v260, %v429
    %v431 = vadd.f32 %v428, %v430
    %v432 = vstv %s174
    %v433 = vmul.f32 %v286, %v432
    %v434 = vadd.f32 %v431, %v433
    %v435 = vstv %s175
    %v436 = vmul.f32 %v312, %v435
    %v437 = vadd.f32 %v434, %v436
    %v438 = vstv %s176
    %v439 = vmul.f32 %v338, %v438
    %v440 = vadd.f32 %v437, %v439
    %v441 = vstv %s177
    %v442 = vmul.f32 %v364, %v441
    %v443 = vadd.f32 %v440, %v442
    %v444 = vmax.f32 %v443, 0.0
    %v445 = vstv %s182
    %v446 = vmul.f32 %v384, %v445
    %v447 = vstv %s186
    %v448 = vadd.f32 %v446, %v447
    %v449 = vstv %s183
    %v450 = vmul.f32 %v404, %v449
    %v451 = vadd.f32 %v448, %v450
    %v452 = vstv %s184
    %v453 = vmul.f32 %v424, %v452
    %v454 = vadd.f32 %v451, %v453
    %v455 = vstv %s185
    %v456 = vmul.f32 %v444, %v455
    %v457 = vadd.f32 %v454, %v456
    %v458 = vmul.f32 %v457, 0.5
    %v459 = vtanh.pop %v458
    %v460 = vmul.f32 %v459, 0.5
    %v461 = vadd.f32 %v460, 0.5
    %462 = vst [vmem:[#allocation15] sm:$0xff] %v461
    // Predicated region
    $region54: #{tpu_custom_call.1} parent=1 // pred_check
      _
    $region55: #{tpu_custom_call.1} parent=1 // pred_check_branch
      %464 = sbr.rel (0) target = $region57
    $region56: #{tpu_custom_call.1} parent=1 // pred_region
      %s466 = ssub.s32 128, 128
      %467 = vsyncadd [#allocation5], %s466
      %s469 = sshll.u32 [#allocation15], 4
      %s470 = int_to_ptr.vmem [resolvable:$true] %s469
      %472 = dma.vmem_to_hbm [thread:$0]  %s470, 128, %s7, [#allocation5]
    $region57: #{tpu_custom_call.1} parent=1 // pred_fallthru
      _
    // Predicated region
    $region58: #{tpu_custom_call.1} parent=1 // pred_check
      _
    $region59: #{tpu_custom_call.1} parent=1 // pred_check_branch
      %474 = sbr.rel (0) target = $region61
    $region60: #{tpu_custom_call.1} parent=1 // pred_region
      %475 = dma.done [#allocation5], 128
    $region61: #{tpu_custom_call.1} parent=1 // pred_fallthru
      _
    %476 = vsyncpa [#allocation4], 1
    %477 = vsyncpa [#allocation5], 1
    %478 = vsyncpa [#allocation6], 1
    %479 = vsyncpa [#allocation7], 1
    %480 = vsyncpa [#allocation11], 1
    %481 = vsyncpa [#allocation14], 1

</llo_original>
